<compile_context>
chip_gen: v7x
topology: tpu7x:2x2x1
jax: 0.10.0
libtpu: 0.0.40
codegen_flags: <defaults>
</compile_context>

<pallas_src>
import functools

import jax
import jax.numpy as jnp
from jax.experimental import pallas as pl
from jax.experimental.pallas import tpu as pltpu

_LANES = 128     # last-dim vreg width
_SUBLANES = 8    # second-to-last vreg width (f32)


def _round_up(n, m):
    return ((n + m - 1) // m) * m


# ----------------------------------------------------------------------------
# Fused kernel body.
# refs = (x_ref, w0, b0, w1, b1, ..., w_end, b_end, o_ref); all tiles in VMEM.
#   hidden layers: w bf16 (K_pad, N_pad), b f32 (1, N_pad)
#   end layer:     w_end f32 (1, K_last_pad), b_end f32 (1, 1)
# ----------------------------------------------------------------------------
def _fused_mlp_kernel(*refs, n_hidden: int):
    x_ref = refs[0]
    o_ref = refs[-1]
    wb = refs[1:-1]

    h = x_ref[...].astype(jnp.float32)                        # (TM, K0_pad)
    for i in range(n_hidden):
        w = wb[2 * i][...]                                    # bf16 (K_pad, N_pad)
        b = wb[2 * i + 1][...]                                # f32  (1, N_pad)
        h = jnp.dot(h.astype(jnp.bfloat16), w,
                    preferred_element_type=jnp.float32) + b   # bf16 MXU, f32 acc
        h = jnp.maximum(h, 0.0)                               # ReLU in f32 (dropout = identity)

    w_end = wb[2 * n_hidden][...]                             # f32 (1, K_last_pad)
    b_end = wb[2 * n_hidden + 1][...]                         # f32 (1, 1)
    # out_features == 1: VPU multiply + XLU row-reduce instead of a 128x-padded matmul.
    y = jnp.sum(h * w_end, axis=-1, keepdims=True) + b_end    # (TM, 1)
    o_ref[...] = jnp.broadcast_to(y, o_ref.shape).astype(o_ref.dtype)  # lane-dense store


# ----------------------------------------------------------------------------
# Parameter init (PyTorch nn.Linear layout: W (out, in), b (out,)) — also used
# by the pure-JAX reference check.
# ----------------------------------------------------------------------------
def init_params(key, num_features, hidden, nr_layers, dtype=jnp.float32):
    def make_linear(k, fan_in, fan_out):
        kw, kb = jax.random.split(k)
        bound = 1.0 / jnp.sqrt(jnp.asarray(fan_in, jnp.float32))
        w = jax.random.uniform(kw, (fan_out, fan_in), dtype, -bound, bound)
        b = jax.random.uniform(kb, (fan_out,), dtype, -bound, bound)
        return w, b

    keys = jax.random.split(key, nr_layers + 1)
    params = {"start": make_linear(keys[0], num_features, hidden), "mid": []}
    for idx in range(nr_layers - 1):
        fan_in = hidden * (2 ** idx)
        fan_out = hidden * (2 ** (idx + 1))
        params["mid"].append(make_linear(keys[1 + idx], fan_in, fan_out))
    params["end"] = make_linear(keys[nr_layers], (2 ** (nr_layers - 1)) * hidden, 1)
    return params


# ----------------------------------------------------------------------------
# One-time preparation: transpose, 128-lane zero-pad, cast hidden weights to bf16,
# keep biases (and the tiny end-layer row vector) in f32.
# ----------------------------------------------------------------------------
def prepare_fused_params(params):
    hidden_layers = [params["start"]] + list(params["mid"])
    prepared = []
    for (w, b) in hidden_layers:
        out_f, in_f = w.shape
        k_pad = _round_up(in_f, _LANES)
        n_pad = _round_up(out_f, _LANES)
        w_t = jnp.zeros((k_pad, n_pad), jnp.bfloat16).at[:in_f, :out_f].set(
            w.T.astype(jnp.bfloat16))
        b2 = jnp.zeros((1, n_pad), jnp.float32).at[0, :out_f].set(b.astype(jnp.float32))
        prepared.append((w_t, b2))

    w_e, b_e = params["end"]                       # (1, K_last), (1,)
    in_f = w_e.shape[1]
    k_pad = _round_up(in_f, _LANES)
    w_end = jnp.zeros((1, k_pad), jnp.float32).at[0, :in_f].set(w_e[0].astype(jnp.float32))
    b_end = b_e.astype(jnp.float32).reshape(1, 1)
    prepared.append((w_end, b_end))

    final_out_features = w_e.shape[0]              # = 1 for this module
    return prepared, final_out_features


def _vmem_limit_bytes(prepared, tm, k0_pad, out_lanes, x_itemsize):
    """Padded weights + activation slabs + I/O double-buffers, with headroom."""
    wb = 0
    max_n = out_lanes
    for (w, b) in prepared:
        wb += w.size * jnp.dtype(w.dtype).itemsize + b.size * jnp.dtype(b.dtype).itemsize
        max_n = max(max_n, w.shape[0], w.shape[-1])
    act = tm * max_n * 4 * 2                                       # a couple of f32 temps
    io = 2 * (tm * k0_pad + tm * out_lanes) * x_itemsize           # double-buffered I/O
    est = 2 * wb + act + io
    return int(min(max(est * 3 // 2 + (8 << 20), 32 << 20), 64 << 20))


# ----------------------------------------------------------------------------
# Forward: jitted (pad + single fused pallas_call + slice).
# ----------------------------------------------------------------------------
@functools.partial(jax.jit, static_argnames=("final_out_features", "tm_target"))
def customized_increasing_nn_forward(x, prepared, final_out_features=1, tm_target=256):
    B, F = x.shape
    n_hidden = len(prepared) - 1
    k0_pad = prepared[0][0].shape[0]

    b_pad = _round_up(B, _SUBLANES)
    tm = min(b_pad, tm_target)
    b_pad = _round_up(b_pad, tm)
    n_blocks = b_pad // tm

    if (b_pad, k0_pad) != (B, F):
        x_p = jnp.zeros((b_pad, k0_pad), x.dtype).at[:B, :F].set(x)
    else:
        x_p = x

    flat_inputs = [x_p]
    in_specs = [pl.BlockSpec((tm, k0_pad), lambda i: (i, 0))]
    for (w, b) in prepared:
        flat_inputs += [w, b]
        # Constant index_map -> weights/biases stay VMEM-resident across grid steps.
        in_specs += [pl.BlockSpec(w.shape, lambda i: (0, 0)),
                     pl.BlockSpec(b.shape, lambda i: (0, 0))]

    out_spec = pl.BlockSpec((tm, _LANES), lambda i: (i, 0))
    kernel = functools.partial(_fused_mlp_kernel, n_hidden=n_hidden)
    vmem_limit = _vmem_limit_bytes(prepared, tm, k0_pad, _LANES,
                                   jnp.dtype(x.dtype).itemsize)

    out_pad = pl.pallas_call(
        kernel,
        grid=(n_blocks,),
        out_shape=jax.ShapeDtypeStruct((b_pad, _LANES), x.dtype),
        in_specs=in_specs,
        out_specs=out_spec,
        compiler_params=pltpu.CompilerParams(
            dimension_semantics=("parallel",),
            vmem_limit_bytes=vmem_limit),
    )(*flat_inputs)

    return out_pad[:B, :final_out_features]        # (B, 1)


# ----------------------------------------------------------------------------
# Demo + correctness check
# ----------------------------------------------------------------------------
if __name__ == "__main__":
    key = jax.random.PRNGKey(0)
    k_x, k_p = jax.random.split(key)

    batch = 8
    num_features = 32
    hidden = 32          # p['hidden_layer_size']
    nr_layers = 3        # p['nr_layers'] -> ending layer takes 2^(3-1)*32 = 128 features

    x = jax.random.normal(k_x, (batch, num_features), dtype=jnp.float32)
    params = init_params(k_p, num_features, hidden, nr_layers, dtype=jnp.float32)
    prepared, final_out = prepare_fused_params(params)

    out = customized_increasing_nn_forward(x, prepared, final_out_features=final_out)
    jax.block_until_ready(out)

    # Reference mimicking the kernel numerics (bf16 dot inputs, f32 accumulation).
    h = x
    for (w, b) in [params["start"]] + list(params["mid"]):
        h = jnp.dot(h.astype(jnp.bfloat16), w.T.astype(jnp.bfloat16),
                    preferred_element_type=jnp.float32) + b.astype(jnp.float32)
        h = jnp.maximum(h, 0.0)
    w_e, b_e = params["end"]
    ref = jnp.sum(h * w_e[0].astype(jnp.float32)[None, :], axis=-1, keepdims=True) + b_e

    # Pure-f32 reference (sanity only; bf16 weights introduce ~0.1-1% deviation).
    h32 = x
    for (w, b) in [params["start"]] + list(params["mid"]):
        h32 = jnp.maximum(h32 @ w.T + b, 0.0)
    ref_f32 = h32 @ w_e.T + b_e

    assert out.shape == (batch, 1), out.shape
    assert jnp.allclose(out, ref, atol=2e-3, rtol=2e-3), (
        float(jnp.max(jnp.abs(out - ref))))
    # Informational only (bf16 vs f32 weight storage).
    _ = float(jnp.max(jnp.abs(out - ref_f32)))

    print("KERNEL_OK")
</pallas_src>

<mosaic_0001>
module attributes {stable_mosaic.version = 11 : i64} {
  func.func @_fused_mlp_kernel(%arg0: i32, %arg1: memref<8x128xf32, #tpu.memory_space<vmem>>, %arg2: memref<128x128xbf16, #tpu.memory_space<vmem>>, %arg3: memref<1x128xf32, #tpu.memory_space<vmem>>, %arg4: memref<128x128xbf16, #tpu.memory_space<vmem>>, %arg5: memref<1x128xf32, #tpu.memory_space<vmem>>, %arg6: memref<128x128xbf16, #tpu.memory_space<vmem>>, %arg7: memref<1x128xf32, #tpu.memory_space<vmem>>, %arg8: memref<1x128xf32, #tpu.memory_space<vmem>>, %arg9: memref<1x1xf32, #tpu.memory_space<vmem>>, %arg10: memref<8x128xf32, #tpu.memory_space<vmem>>) attributes {dimension_semantics = [#tpu.dimension_semantics<parallel>], iteration_bounds = array<i64: 1>, scalar_prefetch = 0 : i64, scratch_operands = 0 : i64, tpu.core_type = #tpu.core_type<tc>, window_params = [{transform_indices = @transform_0, window_bounds = array<i64: 8, 128>}, {pipeline_mode = #tpu.pipeline_mode<synchronous>, transform_indices = @transform_1, window_bounds = array<i64: 128, 128>}, {pipeline_mode = #tpu.pipeline_mode<synchronous>, transform_indices = @transform_2, window_bounds = array<i64: 1, 128>}, {pipeline_mode = #tpu.pipeline_mode<synchronous>, transform_indices = @transform_3, window_bounds = array<i64: 128, 128>}, {pipeline_mode = #tpu.pipeline_mode<synchronous>, transform_indices = @transform_4, window_bounds = array<i64: 1, 128>}, {pipeline_mode = #tpu.pipeline_mode<synchronous>, transform_indices = @transform_5, window_bounds = array<i64: 128, 128>}, {pipeline_mode = #tpu.pipeline_mode<synchronous>, transform_indices = @transform_6, window_bounds = array<i64: 1, 128>}, {pipeline_mode = #tpu.pipeline_mode<synchronous>, transform_indices = @transform_7, window_bounds = array<i64: 1, 128>}, {pipeline_mode = #tpu.pipeline_mode<synchronous>, transform_indices = @transform_8, window_bounds = array<i64: 1, 1>}, {transform_indices = @transform_9, window_bounds = array<i64: 8, 128>}]} {
    %c0 = arith.constant 0 : index
    %c0_0 = arith.constant 0 : index
    %0 = vector.load %arg1[%c0, %c0_0] : memref<8x128xf32, #tpu.memory_space<vmem>>, vector<8x128xf32>
    %c0_1 = arith.constant 0 : index
    %c0_2 = arith.constant 0 : index
    %1 = vector.load %arg2[%c0_1, %c0_2] : memref<128x128xbf16, #tpu.memory_space<vmem>>, vector<128x128xbf16>
    %c0_3 = arith.constant 0 : index
    %c0_4 = arith.constant 0 : index
    %2 = vector.load %arg3[%c0_3, %c0_4] : memref<1x128xf32, #tpu.memory_space<vmem>>, vector<1x128xf32>
    %3 = arith.truncf %0 : vector<8x128xf32> to vector<8x128xbf16>
    %cst = arith.constant dense<0.000000e+00> : vector<8x128xf32>
    %4 = tpu.matmul %3, %1, %cst {dimension_numbers = #tpu.dot_dimension_numbers<[1], [0], [0], [1], [0, 0, 1, 1], [], []>} : vector<8x128xbf16>, vector<128x128xbf16>, vector<8x128xf32> -> vector<8x128xf32>
    %5 = vector.broadcast %2 : vector<1x128xf32> to vector<8x128xf32>
    %6 = arith.addf %4, %5 : vector<8x128xf32>
    %cst_5 = arith.constant 0.000000e+00 : f32
    %7 = vector.broadcast %cst_5 : f32 to vector<8x128xf32>
    %8 = arith.maximumf %6, %7 : vector<8x128xf32>
    %c0_6 = arith.constant 0 : index
    %c0_7 = arith.constant 0 : index
    %9 = vector.load %arg4[%c0_6, %c0_7] : memref<128x128xbf16, #tpu.memory_space<vmem>>, vector<128x128xbf16>
    %c0_8 = arith.constant 0 : index
    %c0_9 = arith.constant 0 : index
    %10 = vector.load %arg5[%c0_8, %c0_9] : memref<1x128xf32, #tpu.memory_space<vmem>>, vector<1x128xf32>
    %11 = arith.truncf %8 : vector<8x128xf32> to vector<8x128xbf16>
    %cst_10 = arith.constant dense<0.000000e+00> : vector<8x128xf32>
    %12 = tpu.matmul %11, %9, %cst_10 {dimension_numbers = #tpu.dot_dimension_numbers<[1], [0], [0], [1], [0, 0, 1, 1], [], []>} : vector<8x128xbf16>, vector<128x128xbf16>, vector<8x128xf32> -> vector<8x128xf32>
    %13 = vector.broadcast %10 : vector<1x128xf32> to vector<8x128xf32>
    %14 = arith.addf %12, %13 : vector<8x128xf32>
    %cst_11 = arith.constant 0.000000e+00 : f32
    %15 = vector.broadcast %cst_11 : f32 to vector<8x128xf32>
    %16 = arith.maximumf %14, %15 : vector<8x128xf32>
    %c0_12 = arith.constant 0 : index
    %c0_13 = arith.constant 0 : index
    %17 = vector.load %arg6[%c0_12, %c0_13] : memref<128x128xbf16, #tpu.memory_space<vmem>>, vector<128x128xbf16>
    %c0_14 = arith.constant 0 : index
    %c0_15 = arith.constant 0 : index
    %18 = vector.load %arg7[%c0_14, %c0_15] : memref<1x128xf32, #tpu.memory_space<vmem>>, vector<1x128xf32>
    %19 = arith.truncf %16 : vector<8x128xf32> to vector<8x128xbf16>
    %cst_16 = arith.constant dense<0.000000e+00> : vector<8x128xf32>
    %20 = tpu.matmul %19, %17, %cst_16 {dimension_numbers = #tpu.dot_dimension_numbers<[1], [0], [0], [1], [0, 0, 1, 1], [], []>} : vector<8x128xbf16>, vector<128x128xbf16>, vector<8x128xf32> -> vector<8x128xf32>
    %21 = vector.broadcast %18 : vector<1x128xf32> to vector<8x128xf32>
    %22 = arith.addf %20, %21 : vector<8x128xf32>
    %cst_17 = arith.constant 0.000000e+00 : f32
    %23 = vector.broadcast %cst_17 : f32 to vector<8x128xf32>
    %24 = arith.maximumf %22, %23 : vector<8x128xf32>
    %c0_18 = arith.constant 0 : index
    %c0_19 = arith.constant 0 : index
    %25 = vector.load %arg8[%c0_18, %c0_19] : memref<1x128xf32, #tpu.memory_space<vmem>>, vector<1x128xf32>
    %c0_20 = arith.constant 0 : index
    %c0_21 = arith.constant 0 : index
    %26 = vector.load %arg9[%c0_20, %c0_21] : memref<1x1xf32, #tpu.memory_space<vmem>>, vector<1x1xf32>
    %27 = vector.broadcast %25 : vector<1x128xf32> to vector<8x128xf32>
    %28 = arith.mulf %24, %27 : vector<8x128xf32>
    %cst_22 = arith.constant dense<0.000000e+00> : vector<8xf32>
    %29 = vector.multi_reduction <add>, %28, %cst_22 [1] : vector<8x128xf32> to vector<8xf32>
    %30 = vector.shape_cast %29 : vector<8xf32> to vector<8x1xf32>
    %31 = vector.broadcast %26 : vector<1x1xf32> to vector<8x1xf32>
    %32 = arith.addf %30, %31 : vector<8x1xf32>
    %33 = vector.shape_cast %32 : vector<8x1xf32> to vector<8x1xf32>
    %34 = vector.broadcast %33 : vector<8x1xf32> to vector<8x128xf32>
    %c0_23 = arith.constant 0 : index
    %c0_24 = arith.constant 0 : index
    %35 = vector.load %arg10[%c0_23, %c0_24] : memref<8x128xf32, #tpu.memory_space<vmem>>, vector<8x128xf32>
    tpu.vector_store %arg10[%c0_23, %c0_24], %34 {strides = array<i32>} : memref<8x128xf32, #tpu.memory_space<vmem>>, vector<8x128xf32>,
    return
  }
  func.func @transform_0(%arg0: i32) -> (i32, i32) {
    %c0_i32 = arith.constant 0 : i32
    %c0_i32_0 = arith.constant 0 : i32
    return %arg0, %c0_i32 : i32, i32
  }
  func.func @transform_1(%arg0: i32) -> (i32, i32) {
    %c0_i32 = arith.constant 0 : i32
    %c0_i32_0 = arith.constant 0 : i32
    %c0_i32_1 = arith.constant 0 : i32
    return %c0_i32, %c0_i32_0 : i32, i32
  }
  func.func @transform_2(%arg0: i32) -> (i32, i32) {
    %c0_i32 = arith.constant 0 : i32
    %c0_i32_0 = arith.constant 0 : i32
    %c0_i32_1 = arith.constant 0 : i32
    return %c0_i32, %c0_i32_0 : i32, i32
  }
  func.func @transform_3(%arg0: i32) -> (i32, i32) {
    %c0_i32 = arith.constant 0 : i32
    %c0_i32_0 = arith.constant 0 : i32
    %c0_i32_1 = arith.constant 0 : i32
    return %c0_i32, %c0_i32_0 : i32, i32
  }
  func.func @transform_4(%arg0: i32) -> (i32, i32) {
    %c0_i32 = arith.constant 0 : i32
    %c0_i32_0 = arith.constant 0 : i32
    %c0_i32_1 = arith.constant 0 : i32
    return %c0_i32, %c0_i32_0 : i32, i32
  }
  func.func @transform_5(%arg0: i32) -> (i32, i32) {
    %c0_i32 = arith.constant 0 : i32
    %c0_i32_0 = arith.constant 0 : i32
    %c0_i32_1 = arith.constant 0 : i32
    return %c0_i32, %c0_i32_0 : i32, i32
  }
  func.func @transform_6(%arg0: i32) -> (i32, i32) {
    %c0_i32 = arith.constant 0 : i32
    %c0_i32_0 = arith.constant 0 : i32
    %c0_i32_1 = arith.constant 0 : i32
    return %c0_i32, %c0_i32_0 : i32, i32
  }
  func.func @transform_7(%arg0: i32) -> (i32, i32) {
    %c0_i32 = arith.constant 0 : i32
    %c0_i32_0 = arith.constant 0 : i32
    %c0_i32_1 = arith.constant 0 : i32
    return %c0_i32, %c0_i32_0 : i32, i32
  }
  func.func @transform_8(%arg0: i32) -> (i32, i32) {
    %c0_i32 = arith.constant 0 : i32
    %c0_i32_0 = arith.constant 0 : i32
    %c0_i32_1 = arith.constant 0 : i32
    return %c0_i32, %c0_i32_0 : i32, i32
  }
  func.func @transform_9(%arg0: i32) -> (i32, i32) {
    %c0_i32 = arith.constant 0 : i32
    %c0_i32_0 = arith.constant 0 : i32
    return %arg0, %c0_i32 : i32, i32
  }
}

</mosaic_0001>

<llo_original>
// kernel: customized_increasing_nn_forward.1
$region0: #{customized_increasing_nn_forward.1}
  #allocation0 [shape = 'u32[]', space=smem, size = 0x4, offset = 0x4, fixed_abs, tag = 'smem constant byte address 0x4 - core index']
  #allocation1 [shape = 'u32[144,128]{1,0:T(1,128)}', space=vmem, size = 0x12000, scoped, tag = 'internal scratch']
  #allocation2 [shape = 'f32[1,1]{1,0:T(1,128)S(1)}', space=vmem, size = 0x200, scoped, tag = 'scoped memory for customized_increasing_nn_forward.1']
  %s0 = inlined_call_operand.vmem [shape: f32[8,128], index: 0, kind: input, shape index: {}]
  %s1 = inlined_call_operand.hbm [shape: bf16[128,128], index: 1, kind: input, shape index: {}]
  %s2 = inlined_call_operand.vmem [shape: f32[1,128], index: 2, kind: input, shape index: {}]
  %s3 = inlined_call_operand.hbm [shape: bf16[128,128], index: 3, kind: input, shape index: {}]
  %s4 = inlined_call_operand.vmem [shape: f32[1,128], index: 4, kind: input, shape index: {}]
  %s5 = inlined_call_operand.hbm [shape: bf16[128,128], index: 5, kind: input, shape index: {}]
  %s6 = inlined_call_operand.vmem [shape: f32[1,128], index: 6, kind: input, shape index: {}]
  %s7 = inlined_call_operand.vmem [shape: f32[1,128], index: 7, kind: input, shape index: {}]
  %s8 = inlined_call_operand.<no memory space> [shape: f32[1,1], index: 8, kind: input, shape index: {}]
  %s9 = inlined_call_operand.vmem [shape: f32[8,128], index: 9, kind: output, shape index: {}]
  %s10 = sld [smem:[#allocation0]]
  $region58: #{customized_increasing_nn_forward.1} parent=0
    _
  %s12 = ssub.s32 1, %s10
  %s13 = scalar_select 0, %s12, %s10
  %v14 = vstv %s8
  %15 = vst [vmem:[#allocation2] sm:$0x1] %v14
  $region1: #{customized_increasing_nn_forward.1} parent=0
    #allocation3 [shape = 'u8[32768]{0}', space=vmem, size = 0x8000, scoped, tag = 'input window, operand 1, single buffered']
    #allocation4 [shape = 's32[1]{0}', space=sflag, size = 0x4, scoped, tag = 'scoped memory for customized_increasing_nn_forward.1']
    #allocation5 [shape = 'u8[32768]{0}', space=vmem, size = 0x8000, scoped, tag = 'input window, operand 3, single buffered']
    #allocation6 [shape = 's32[1]{0}', space=sflag, size = 0x4, scoped, tag = 'scoped memory for customized_increasing_nn_forward.1']
    #allocation7 [shape = 'u8[32768]{0}', space=vmem, size = 0x8000, scoped, tag = 'input window, operand 5, single buffered']
    %16 = vsyncpa [#allocation4], 0
    %17 = vsyncpa [#allocation6], 0
    // Predicated region
    $region2: #{customized_increasing_nn_forward.1} parent=1 // pred_check
      _
    $region3: #{customized_increasing_nn_forward.1} parent=1 // pred_check_branch
      %19 = sbr.rel (0) target = $region5
    $region4: #{customized_increasing_nn_forward.1} parent=1 // pred_region
      _
    $region5: #{customized_increasing_nn_forward.1} parent=1 // pred_fallthru
      _
    // Predicated region
    $region6: #{customized_increasing_nn_forward.1} parent=1 // pred_check
      _
    $region7: #{customized_increasing_nn_forward.1} parent=1 // pred_check_branch
      %21 = sbr.rel (0) target = $region9
    $region8: #{customized_increasing_nn_forward.1} parent=1 // pred_region
      %s23 = ssub.s32 1024, 1024
      %24 = vsyncadd [#allocation4], %s23
      %s25 = sshll.u32 [#allocation3], 4
      %s26 = int_to_ptr.vmem [resolvable:$true] %s25
      %31 = dma.hbm_to_vmem [thread:$0]  %s1, 1024, %s26, [#allocation4], 64, 64, 4
    $region9: #{customized_increasing_nn_forward.1} parent=1 // pred_fallthru
      _
    // Predicated region
    $region10: #{customized_increasing_nn_forward.1} parent=1 // pred_check
      _
    $region11: #{customized_increasing_nn_forward.1} parent=1 // pred_check_branch
      %33 = sbr.rel (0) target = $region13
    $region12: #{customized_increasing_nn_forward.1} parent=1 // pred_region
      _
    $region13: #{customized_increasing_nn_forward.1} parent=1 // pred_fallthru
      _
    // Predicated region
    $region14: #{customized_increasing_nn_forward.1} parent=1 // pred_check
      _
    $region15: #{customized_increasing_nn_forward.1} parent=1 // pred_check_branch
      %35 = sbr.rel (0) target = $region17
    $region16: #{customized_increasing_nn_forward.1} parent=1 // pred_region
      %s37 = ssub.s32 1024, 1024
      %38 = vsyncadd [#allocation6], %s37
      %s39 = sshll.u32 [#allocation5], 4
      %s40 = int_to_ptr.vmem [resolvable:$true] %s39
      %45 = dma.hbm_to_vmem [thread:$0]  %s3, 1024, %s40, [#allocation6], 64, 64, 4
    $region17: #{customized_increasing_nn_forward.1} parent=1 // pred_fallthru
      _
    // Predicated region
    $region18: #{customized_increasing_nn_forward.1} parent=1 // pred_check
      _
    $region19: #{customized_increasing_nn_forward.1} parent=1 // pred_check_branch
      %47 = sbr.rel (0) target = $region21
    $region20: #{customized_increasing_nn_forward.1} parent=1 // pred_region
      _
    $region21: #{customized_increasing_nn_forward.1} parent=1 // pred_fallthru
      _
    // Predicated region
    $region22: #{customized_increasing_nn_forward.1} parent=1 // pred_check
      _
    $region23: #{customized_increasing_nn_forward.1} parent=1 // pred_check_branch
      %49 = sbr.rel (0) target = $region25
    $region24: #{customized_increasing_nn_forward.1} parent=1 // pred_region
      %s51 = ssub.s32 1024, 1024
      %52 = vsyncadd [#allocation6], %s51
      %s53 = sshll.u32 [#allocation7], 4
      %s54 = int_to_ptr.vmem [resolvable:$true] %s53
      %59 = dma.hbm_to_vmem [thread:$0]  %s5, 1024, %s54, [#allocation6], 64, 64, 4
    $region25: #{customized_increasing_nn_forward.1} parent=1 // pred_fallthru
      _
    // Predicated region
    $region26: #{customized_increasing_nn_forward.1} parent=1 // pred_check
      _
    $region27: #{customized_increasing_nn_forward.1} parent=1 // pred_check_branch
      %61 = sbr.rel (0) target = $region29
    $region28: #{customized_increasing_nn_forward.1} parent=1 // pred_region
      _
    $region29: #{customized_increasing_nn_forward.1} parent=1 // pred_fallthru
      _
    // Predicated region
    $region30: #{customized_increasing_nn_forward.1} parent=1 // pred_check
      _
    $region31: #{customized_increasing_nn_forward.1} parent=1 // pred_check_branch
      %63 = sbr.rel (0) target = $region33
    $region32: #{customized_increasing_nn_forward.1} parent=1 // pred_region
      _
    $region33: #{customized_increasing_nn_forward.1} parent=1 // pred_fallthru
      _
    // Predicated region
    $region34: #{customized_increasing_nn_forward.1} parent=1 // pred_check
      _
    $region35: #{customized_increasing_nn_forward.1} parent=1 // pred_check_branch
      %65 = sbr.rel (0) target = $region37
    $region36: #{customized_increasing_nn_forward.1} parent=1 // pred_region
      _
    $region37: #{customized_increasing_nn_forward.1} parent=1 // pred_fallthru
      _
    // Predicated region
    $region38: #{customized_increasing_nn_forward.1} parent=1 // pred_check
      _
    $region39: #{customized_increasing_nn_forward.1} parent=1 // pred_check_branch
      %67 = sbr.rel (0) target = $region41
    $region40: #{customized_increasing_nn_forward.1} parent=1 // pred_region
      %68 = dma.done [#allocation4], 1024
    $region41: #{customized_increasing_nn_forward.1} parent=1 // pred_fallthru
      _
    // Predicated region
    $region42: #{customized_increasing_nn_forward.1} parent=1 // pred_check
      _
    $region43: #{customized_increasing_nn_forward.1} parent=1 // pred_check_branch
      %70 = sbr.rel (0) target = $region45
    $region44: #{customized_increasing_nn_forward.1} parent=1 // pred_region
      %71 = dma.done [#allocation6], 1024
    $region45: #{customized_increasing_nn_forward.1} parent=1 // pred_fallthru
      _
    // Predicated region
    $region46: #{customized_increasing_nn_forward.1} parent=1 // pred_check
      _
    $region47: #{customized_increasing_nn_forward.1} parent=1 // pred_check_branch
      %73 = sbr.rel (0) target = $region49
    $region48: #{customized_increasing_nn_forward.1} parent=1 // pred_region
      %74 = dma.done [#allocation6], 1024
    $region49: #{customized_increasing_nn_forward.1} parent=1 // pred_fallthru
      _
    %v76 = vld [vmem:[%s0] sm:$0xff]
    %v77 = vld [vmem:[#allocation3] sm:$0xf]
    %v78 = vld [vmem:[#allocation3 + $0x4] sm:$0xf]
    %v79 = vld [vmem:[#allocation3 + $0x8] sm:$0xf]
    %v80 = vld [vmem:[#allocation3 + $0xc] sm:$0xf]
    %v81 = vld [vmem:[#allocation3 + $0x10] sm:$0xf]
    %v82 = vld [vmem:[#allocation3 + $0x14] sm:$0xf]
    %v83 = vld [vmem:[#allocation3 + $0x18] sm:$0xf]
    %v84 = vld [vmem:[#allocation3 + $0x1c] sm:$0xf]
    %v85 = vld [vmem:[#allocation3 + $0x20] sm:$0xf]
    %v86 = vld [vmem:[#allocation3 + $0x24] sm:$0xf]
    %v87 = vld [vmem:[#allocation3 + $0x28] sm:$0xf]
    %v88 = vld [vmem:[#allocation3 + $0x2c] sm:$0xf]
    %v89 = vld [vmem:[#allocation3 + $0x30] sm:$0xf]
    %v90 = vld [vmem:[#allocation3 + $0x34] sm:$0xf]
    %v91 = vld [vmem:[#allocation3 + $0x38] sm:$0xf]
    %v92 = vld [vmem:[#allocation3 + $0x3c] sm:$0xf]
    %v93 = vld [vmem:[%s2] sm:$0x1]
    %v94 = vpack.c.bf16 %v76, %v76
    %v96 = vlaneseq
    %v97 = vshrl.u32 %v96, 7
    %v98 = vsub.s32 0, %v97
    %v99 = vrot.slane %v93, %v98
    %v117 = vunpack.c.l.b16 %v77
    %v118 = vunpack.c.l.b16 %v78
    %v119 = vunpack.c.l.b16 %v79
    %v120 = vunpack.c.l.b16 %v80
    %v121 = vunpack.c.l.b16 %v81
    %v122 = vunpack.c.l.b16 %v82
    %v123 = vunpack.c.l.b16 %v83
    %v124 = vunpack.c.l.b16 %v84
    %v125 = vunpack.c.l.b16 %v85
    %v126 = vunpack.c.l.b16 %v86
    %v127 = vunpack.c.l.b16 %v87
    %v128 = vunpack.c.l.b16 %v88
    %v129 = vunpack.c.l.b16 %v89
    %v130 = vunpack.c.l.b16 %v90
    %v131 = vunpack.c.l.b16 %v91
    %v132 = vunpack.c.l.b16 %v92
    %v133 = vpack.c.b16 %v118, %v117
    %v134 = vpack.c.b16 %v120, %v119
    %v135 = vpack.c.b16 %v122, %v121
    %v136 = vpack.c.b16 %v124, %v123
    %v137 = vpack.c.b16 %v126, %v125
    %v138 = vpack.c.b16 %v128, %v127
    %v139 = vpack.c.b16 %v130, %v129
    %v140 = vpack.c.b16 %v132, %v131
    %149 = vmatprep.subr.bf16.mxu0 0
    %150 = vmatpush1.bf16.msra.mxu0 %v133
    %151 = vmatprep.subr.bf16.mxu0 0
    %152 = vmatpush1.bf16.msra.mxu0 %v134
    %153 = vmatprep.subr.bf16.mxu0 0
    %154 = vmatpush1.bf16.msra.mxu0 %v135
    %155 = vmatprep.subr.bf16.mxu0 0
    %156 = vmatpush1.bf16.msra.mxu0 %v136
    %157 = vmatprep.subr.bf16.mxu0 0
    %158 = vmatpush1.bf16.msra.mxu0 %v137
    %159 = vmatprep.subr.bf16.mxu0 0
    %160 = vmatpush1.bf16.msra.mxu0 %v138
    %161 = vmatprep.subr.bf16.mxu0 0
    %162 = vmatpush1.bf16.msra.mxu0 %v139
    %163 = vmatprep.subr.bf16.mxu0 0
    %164 = vmatpush1.bf16.msra.mxu0 %v140
    %165 = vmatprep.subr.bf16.mxu0 0
    %166 = vmatpush1.bf16.msra.mxu0 0
    %167 = vmatprep.subr.bf16.mxu0 0
    %168 = vmatpush1.bf16.msra.mxu0 0
    %169 = vmatprep.subr.bf16.mxu0 0
    %170 = vmatpush1.bf16.msra.mxu0 0
    %171 = vmatprep.subr.bf16.mxu0 0
    %172 = vmatpush1.bf16.msra.mxu0 0
    %173 = vmatprep.subr.bf16.mxu0 0
    %174 = vmatpush1.bf16.msra.mxu0 0
    %175 = vmatprep.subr.bf16.mxu0 0
    %176 = vmatpush1.bf16.msra.mxu0 0
    %177 = vmatprep.subr.bf16.mxu0 0
    %178 = vmatpush1.bf16.msra.mxu0 0
    %179 = vmatprep.subr.bf16.mxu0 0
    %180 = vmatpush1.bf16.msra.mxu0 0
    %181 = vmatprep.mubr.bf16.mxu0 0
    %182 = vmatmul.mubr.bf16.gmra.mrb[0].mxu0 %v94
    %v183 = vpop.f32.mrb[0].mxu0
    %v184 = vadd.f32 %v99, %v183
    %v185 = vpop.f32.mrb[0].mxu0
    %v186 = vpop.f32.mrb[0].mxu0
    %v187 = vpop.f32.mrb[0].mxu0
    %188 = vdwg.mxu0
    %v189 = vmax.f32 %v184, 0.0
    %v190 = vld [vmem:[#allocation5] sm:$0xf]
    %v191 = vld [vmem:[#allocation5 + $0x4] sm:$0xf]
    %v192 = vld [vmem:[#allocation5 + $0x8] sm:$0xf]
    %v193 = vld [vmem:[#allocation5 + $0xc] sm:$0xf]
    %v194 = vld [vmem:[#allocation5 + $0x10] sm:$0xf]
    %v195 = vld [vmem:[#allocation5 + $0x14] sm:$0xf]
    %v196 = vld [vmem:[#allocation5 + $0x18] sm:$0xf]
    %v197 = vld [vmem:[#allocation5 + $0x1c] sm:$0xf]
    %v198 = vld [vmem:[#allocation5 + $0x20] sm:$0xf]
    %v199 = vld [vmem:[#allocation5 + $0x24] sm:$0xf]
    %v200 = vld [vmem:[#allocation5 + $0x28] sm:$0xf]
    %v201 = vld [vmem:[#allocation5 + $0x2c] sm:$0xf]
    %v202 = vld [vmem:[#allocation5 + $0x30] sm:$0xf]
    %v203 = vld [vmem:[#allocation5 + $0x34] sm:$0xf]
    %v204 = vld [vmem:[#allocation5 + $0x38] sm:$0xf]
    %v205 = vld [vmem:[#allocation5 + $0x3c] sm:$0xf]
    %v206 = vld [vmem:[%s4] sm:$0x1]
    %v207 = vpack.c.bf16 %v189, %v189
    %v209 = vlaneseq
    %v210 = vshrl.u32 %v209, 7
    %v211 = vsub.s32 0, %v210
    %v212 = vrot.slane %v206, %v211
    %v230 = vunpack.c.l.b16 %v190
    %v231 = vunpack.c.l.b16 %v191
    %v232 = vunpack.c.l.b16 %v192
    %v233 = vunpack.c.l.b16 %v193
    %v234 = vunpack.c.l.b16 %v194
    %v235 = vunpack.c.l.b16 %v195
    %v236 = vunpack.c.l.b16 %v196
    %v237 = vunpack.c.l.b16 %v197
    %v238 = vunpack.c.l.b16 %v198
    %v239 = vunpack.c.l.b16 %v199
    %v240 = vunpack.c.l.b16 %v200
    %v241 = vunpack.c.l.b16 %v201
    %v242 = vunpack.c.l.b16 %v202
    %v243 = vunpack.c.l.b16 %v203
    %v244 = vunpack.c.l.b16 %v204
    %v245 = vunpack.c.l.b16 %v205
    %v246 = vpack.c.b16 %v231, %v230
    %v247 = vpack.c.b16 %v233, %v232
    %v248 = vpack.c.b16 %v235, %v234
    %v249 = vpack.c.b16 %v237, %v236
    %v250 = vpack.c.b16 %v239, %v238
    %v251 = vpack.c.b16 %v241, %v240
    %v252 = vpack.c.b16 %v243, %v242
    %v253 = vpack.c.b16 %v245, %v244
    %262 = vmatprep.subr.bf16.mxu0 0
    %263 = vmatpush1.bf16.msra.mxu0 %v246
    %264 = vmatprep.subr.bf16.mxu0 0
    %265 = vmatpush1.bf16.msra.mxu0 %v247
    %266 = vmatprep.subr.bf16.mxu0 0
    %267 = vmatpush1.bf16.msra.mxu0 %v248
    %268 = vmatprep.subr.bf16.mxu0 0
    %269 = vmatpush1.bf16.msra.mxu0 %v249
    %270 = vmatprep.subr.bf16.mxu0 0
    %271 = vmatpush1.bf16.msra.mxu0 %v250
    %272 = vmatprep.subr.bf16.mxu0 0
    %273 = vmatpush1.bf16.msra.mxu0 %v251
    %274 = vmatprep.subr.bf16.mxu0 0
    %275 = vmatpush1.bf16.msra.mxu0 %v252
    %276 = vmatprep.subr.bf16.mxu0 0
    %277 = vmatpush1.bf16.msra.mxu0 %v253
    %278 = vmatprep.subr.bf16.mxu0 0
    %279 = vmatpush1.bf16.msra.mxu0 0
    %280 = vmatprep.subr.bf16.mxu0 0
    %281 = vmatpush1.bf16.msra.mxu0 0
    %282 = vmatprep.subr.bf16.mxu0 0
    %283 = vmatpush1.bf16.msra.mxu0 0
    %284 = vmatprep.subr.bf16.mxu0 0
    %285 = vmatpush1.bf16.msra.mxu0 0
    %286 = vmatprep.subr.bf16.mxu0 0
    %287 = vmatpush1.bf16.msra.mxu0 0
    %288 = vmatprep.subr.bf16.mxu0 0
    %289 = vmatpush1.bf16.msra.mxu0 0
    %290 = vmatprep.subr.bf16.mxu0 0
    %291 = vmatpush1.bf16.msra.mxu0 0
    %292 = vmatprep.subr.bf16.mxu0 0
    %293 = vmatpush1.bf16.msra.mxu0 0
    %294 = vmatprep.mubr.bf16.mxu0 0
    %295 = vmatmul.mubr.bf16.gmra.mrb[0].mxu0 %v207
    %v296 = vpop.f32.mrb[0].mxu0
    %v297 = vadd.f32 %v212, %v296
    %v298 = vpop.f32.mrb[0].mxu0
    %v299 = vpop.f32.mrb[0].mxu0
    %v300 = vpop.f32.mrb[0].mxu0
    %301 = vdwg.mxu0
    %v302 = vmax.f32 %v297, 0.0
    %v303 = vld [vmem:[#allocation7] sm:$0xf]
    %v304 = vld [vmem:[#allocation7 + $0x4] sm:$0xf]
    %v305 = vld [vmem:[#allocation7 + $0x8] sm:$0xf]
    %v306 = vld [vmem:[#allocation7 + $0xc] sm:$0xf]
    %v307 = vld [vmem:[#allocation7 + $0x10] sm:$0xf]
    %v308 = vld [vmem:[#allocation7 + $0x14] sm:$0xf]
    %v309 = vld [vmem:[#allocation7 + $0x18] sm:$0xf]
    %v310 = vld [vmem:[#allocation7 + $0x1c] sm:$0xf]
    %v311 = vld [vmem:[#allocation7 + $0x20] sm:$0xf]
    %v312 = vld [vmem:[#allocation7 + $0x24] sm:$0xf]
    %v313 = vld [vmem:[#allocation7 + $0x28] sm:$0xf]
    %v314 = vld [vmem:[#allocation7 + $0x2c] sm:$0xf]
    %v315 = vld [vmem:[#allocation7 + $0x30] sm:$0xf]
    %v316 = vld [vmem:[#allocation7 + $0x34] sm:$0xf]
    %v317 = vld [vmem:[#allocation7 + $0x38] sm:$0xf]
    %v318 = vld [vmem:[#allocation7 + $0x3c] sm:$0xf]
    %v319 = vld [vmem:[%s6] sm:$0x1]
    %v320 = vpack.c.bf16 %v302, %v302
    %v322 = vlaneseq
    %v323 = vshrl.u32 %v322, 7
    %v324 = vsub.s32 0, %v323
    %v325 = vrot.slane %v319, %v324
    %v343 = vunpack.c.l.b16 %v303
    %v344 = vunpack.c.l.b16 %v304
    %v345 = vunpack.c.l.b16 %v305
    %v346 = vunpack.c.l.b16 %v306
    %v347 = vunpack.c.l.b16 %v307
    %v348 = vunpack.c.l.b16 %v308
    %v349 = vunpack.c.l.b16 %v309
    %v350 = vunpack.c.l.b16 %v310
    %v351 = vunpack.c.l.b16 %v311
    %v352 = vunpack.c.l.b16 %v312
    %v353 = vunpack.c.l.b16 %v313
    %v354 = vunpack.c.l.b16 %v314
    %v355 = vunpack.c.l.b16 %v315
    %v356 = vunpack.c.l.b16 %v316
    %v357 = vunpack.c.l.b16 %v317
    %v358 = vunpack.c.l.b16 %v318
    %v359 = vpack.c.b16 %v344, %v343
    %v360 = vpack.c.b16 %v346, %v345
    %v361 = vpack.c.b16 %v348, %v347
    %v362 = vpack.c.b16 %v350, %v349
    %v363 = vpack.c.b16 %v352, %v351
    %v364 = vpack.c.b16 %v354, %v353
    %v365 = vpack.c.b16 %v356, %v355
    %v366 = vpack.c.b16 %v358, %v357
    %375 = vmatprep.subr.bf16.mxu0 0
    %376 = vmatpush1.bf16.msra.mxu0 %v359
    %377 = vmatprep.subr.bf16.mxu0 0
    %378 = vmatpush1.bf16.msra.mxu0 %v360
    %379 = vmatprep.subr.bf16.mxu0 0
    %380 = vmatpush1.bf16.msra.mxu0 %v361
    %381 = vmatprep.subr.bf16.mxu0 0
    %382 = vmatpush1.bf16.msra.mxu0 %v362
    %383 = vmatprep.subr.bf16.mxu0 0
    %384 = vmatpush1.bf16.msra.mxu0 %v363
    %385 = vmatprep.subr.bf16.mxu0 0
    %386 = vmatpush1.bf16.msra.mxu0 %v364
    %387 = vmatprep.subr.bf16.mxu0 0
    %388 = vmatpush1.bf16.msra.mxu0 %v365
    %389 = vmatprep.subr.bf16.mxu0 0
    %390 = vmatpush1.bf16.msra.mxu0 %v366
    %391 = vmatprep.subr.bf16.mxu0 0
    %392 = vmatpush1.bf16.msra.mxu0 0
    %393 = vmatprep.subr.bf16.mxu0 0
    %394 = vmatpush1.bf16.msra.mxu0 0
    %395 = vmatprep.subr.bf16.mxu0 0
    %396 = vmatpush1.bf16.msra.mxu0 0
    %397 = vmatprep.subr.bf16.mxu0 0
    %398 = vmatpush1.bf16.msra.mxu0 0
    %399 = vmatprep.subr.bf16.mxu0 0
    %400 = vmatpush1.bf16.msra.mxu0 0
    %401 = vmatprep.subr.bf16.mxu0 0
    %402 = vmatpush1.bf16.msra.mxu0 0
    %403 = vmatprep.subr.bf16.mxu0 0
    %404 = vmatpush1.bf16.msra.mxu0 0
    %405 = vmatprep.subr.bf16.mxu0 0
    %406 = vmatpush1.bf16.msra.mxu0 0
    %407 = vmatprep.mubr.bf16.mxu0 0
    %408 = vmatmul.mubr.bf16.gmra.mrb[0].mxu0 %v320
    %v409 = vpop.f32.mrb[0].mxu0
    %v410 = vadd.f32 %v325, %v409
    %v411 = vpop.f32.mrb[0].mxu0
    %v412 = vpop.f32.mrb[0].mxu0
    %v413 = vpop.f32.mrb[0].mxu0
    %414 = vdwg.mxu0
    %v415 = vmax.f32 %v410, 0.0
    %v416 = vld [vmem:[%s7] sm:$0x1]
    %v417 = vld [vmem:[#allocation2] sm:$0x1]
    %v419 = vlaneseq
    %v420 = vshrl.u32 %v419, 7
    %v421 = vsub.s32 0, %v420
    %v422 = vrot.slane %v416, %v421
    %v424 = vmul.f32 %v415, %v422
    %425 = vadd.xlane.f32.xlu0 %v424
    %v426 = vpop.xlane.xlu0 %425
    %v428 = vlaneseq
    %v429 = vshrl.u32 %v428, 7
    %v430 = vsub.s32 0, %v429
    %v431 = vrot.slane %v417, %v430
    %v433 = vadd.f32 %v426, %v431
    %435 = vset.pattern.permute.xlu0 0
    %436 = vperm.xlu0 %435, %v433
    %v437 = vpop.permute.xlu0 %436
    %439 = vst [vmem:[%s9] sm:$0xff] %v437
    // Predicated region
    $region50: #{customized_increasing_nn_forward.1} parent=1 // pred_check
      _
    $region51: #{customized_increasing_nn_forward.1} parent=1 // pred_check_branch
      %441 = sbr.rel (0) target = $region53
    $region52: #{customized_increasing_nn_forward.1} parent=1 // pred_region
      _
    $region53: #{customized_increasing_nn_forward.1} parent=1 // pred_fallthru
      _
    // Predicated region
    $region54: #{customized_increasing_nn_forward.1} parent=1 // pred_check
      _
    $region55: #{customized_increasing_nn_forward.1} parent=1 // pred_check_branch
      %443 = sbr.rel (0) target = $region57
    $region56: #{customized_increasing_nn_forward.1} parent=1 // pred_region
      _
    $region57: #{customized_increasing_nn_forward.1} parent=1 // pred_fallthru
      _
    %444 = vsyncpa [#allocation4], 1
    %445 = vsyncpa [#allocation6], 1

</llo_original>
